<compile_context>
chip_gen: v6e
topology: v6e:2x2x1
jax: 0.10.0
libtpu: 0.0.40
codegen_flags: <defaults>
</compile_context>

<pallas_src>
import functools

import jax
import jax.numpy as jnp
from jax.experimental import pallas as pl
from jax.experimental.pallas import tpu as pltpu


# ----------------------------------------------------------------------------
# Positional encoding table (standard LTAE sinusoid table).
# ----------------------------------------------------------------------------
def get_positional_encoding(max_len, d_model, T=1000):
    pos = jnp.arange(max_len, dtype=jnp.float32)[:, None]          # (L, 1)
    i = jnp.arange(d_model, dtype=jnp.float32)[None, :]            # (1, D)
    angle = pos / jnp.power(float(T), (2.0 * jnp.floor(i / 2.0)) / float(d_model))
    even = (jnp.arange(d_model) % 2 == 0)[None, :]
    return jnp.where(even, jnp.sin(angle), jnp.cos(angle)).astype(jnp.float32)


# ----------------------------------------------------------------------------
# Pallas kernel: one batch-tile of the LTAE forward
#   (inconv + pos-enc add + multi-head "query-as-parameter" attention + MLP).
# ----------------------------------------------------------------------------
def _make_ltae_kernel(n_mlp):
    def kernel(*refs):
        (x_ref, pe_ref, w_in_ref, b_in_ref, w_s_ref, b_s_ref,
         expand_ref, segsum_ref) = refs[:8]
        mlp_refs = refs[8:8 + 2 * n_mlp]
        o_ref = refs[8 + 2 * n_mlp]

        # inconv: Linear + ReLU (bf16 streamed inputs, f32 accumulation).
        h = jnp.dot(x_ref[...], w_in_ref[...],
                    preferred_element_type=jnp.float32) + b_in_ref[...]
        h = jnp.maximum(h, 0.0)                                     # (N, d_model)

        # add positional encoding (values for the attention are e as well).
        e = h + pe_ref[...].astype(jnp.float32)                     # (N, d_model)

        # attention scores for ALL heads at once: the query parameter and the
        # 1/temperature scale are pre-folded into w_score/b_score (wrapper).
        s = jnp.dot(e.astype(jnp.bfloat16), w_s_ref[...],
                    preferred_element_type=jnp.float32) + b_s_ref[...]   # (N, H)

        # Softmax over time within each sample, all heads vectorized.
        # Softmax is shift-invariant per (sample, head); subtracting the
        # per-head max over the whole batch tile is valid and avoids any
        # grouped (per-sample) max.
        m = jnp.max(s, axis=0, keepdims=True)                       # (1, H)
        p = jnp.exp(s - m)                                          # (N, H)

        # Expand head weights across that head's d_head feature slice
        # (constant 0/1 matrix E) and sum over time per sample (constant 0/1
        # segment matrix S) -- both are MXU matmuls, no reshapes needed.
        p_e = jnp.dot(p, expand_ref[...],
                      preferred_element_type=jnp.float32)           # (N, d_model)
        y_un = jnp.dot(segsum_ref[...], p_e * e,
                       preferred_element_type=jnp.float32)          # (TB, d_model)
        den = jnp.dot(segsum_ref[...], p_e,
                      preferred_element_type=jnp.float32)           # (TB, d_model)
        den = jnp.maximum(den, 1e-30)                               # underflow guard
        y = y_un * pl.reciprocal(den, approx=True)                  # (TB, d_model)

        # MLP head (LinearLayer = Linear + ReLU); dropout is identity in eval.
        for li in range(n_mlp):
            w = mlp_refs[2 * li][...]
            b = mlp_refs[2 * li + 1][...]
            y = jnp.maximum(
                jnp.dot(y.astype(jnp.bfloat16), w,
                        preferred_element_type=jnp.float32) + b, 0.0)

        o_ref[...] = y.astype(o_ref.dtype)                          # (TB, d_out)

    return kernel


# ----------------------------------------------------------------------------
# Wrapper: parameter folding, PE gather (glue), batch tiling, pallas_call.
# ----------------------------------------------------------------------------
def ltae_forward(x, positions, params, *, n_head, d_k, n_neurons,
                 max_temporal_shift, pe_table, batch_tile=128):
    B, T_seq, c_in = x.shape
    d_model = params["w_in"].shape[1]
    d_head = d_model // n_head
    d_out = n_neurons[-1]
    n_mlp = len(n_neurons) - 1
    temperature = float(d_k) ** 0.5

    # ---- fold the query parameter + temperature into the key projection ----
    # scores = (e @ w_k + b_k) . q / temp  ==  e @ w_score + b_score
    wk3 = params["w_k"].reshape(d_model, n_head, d_k)
    w_score = jnp.einsum("mhd,hd->mh", wk3, params["query"]) / temperature   # (D, H)
    b_score = (jnp.einsum("hd,hd->h", params["b_k"].reshape(n_head, d_k),
                          params["query"]) / temperature)[None, :]           # (1, H)

    # constant 0/1 head->feature expansion matrix: E[h, m] = (m // d_head == h)
    expand = (jnp.arange(d_model)[None, :] // d_head
              == jnp.arange(n_head)[:, None]).astype(jnp.float32)            # (H, D)

    # ---- batch tiling (pad B to a multiple of TB with zeros) ----
    TB = min(batch_tile, B)
    B_pad = ((B + TB - 1) // TB) * TB
    if B_pad != B:
        pad = B_pad - B
        x = jnp.pad(x, ((0, pad), (0, 0), (0, 0)))
        positions = jnp.pad(positions, ((0, pad), (0, 0)))
    N = TB * T_seq          # rows per grid step

    # constant 0/1 per-sample time-sum matrix: S[b, n] = (n // T_seq == b)
    segsum = (jnp.arange(N)[None, :] // T_seq
              == jnp.arange(TB)[:, None]).astype(jnp.float32)                # (TB, N)

    # ---- positional-encoding gather (plain-JAX glue), bf16 streaming ----
    pe = jnp.take(pe_table, positions + max_temporal_shift, axis=0)          # (Bp,T,D)
    x_flat = x.reshape(B_pad * T_seq, c_in).astype(jnp.bfloat16)
    pe_flat = pe.reshape(B_pad * T_seq, d_model).astype(jnp.bfloat16)

    # weights streamed bf16 (f32 accumulation in-kernel); biases stay f32
    w_in = params["w_in"].astype(jnp.bfloat16)
    b_in = params["b_in"]
    w_score_bf = w_score.astype(jnp.bfloat16)
    mlp_w = [w.astype(jnp.bfloat16) for (w, _) in params["mlp"]]
    mlp_b = [b for (_, b) in params["mlp"]]

    kernel = _make_ltae_kernel(n_mlp)
    num_blocks = B_pad // TB

    in_specs = [
        pl.BlockSpec((N, c_in), lambda b: (b, 0)),            # x (bf16 stream)
        pl.BlockSpec((N, d_model), lambda b: (b, 0)),         # pos-enc (bf16 stream)
        pl.BlockSpec((c_in, d_model), lambda b: (0, 0)),      # W_in
        pl.BlockSpec((1, d_model), lambda b: (0, 0)),         # b_in
        pl.BlockSpec((d_model, n_head), lambda b: (0, 0)),    # W_score (key . query folded)
        pl.BlockSpec((1, n_head), lambda b: (0, 0)),          # b_score
        pl.BlockSpec((n_head, d_model), lambda b: (0, 0)),    # head expansion E
        pl.BlockSpec((TB, N), lambda b: (0, 0)),              # per-sample time sum S
    ]
    args = [x_flat, pe_flat, w_in, b_in, w_score_bf, b_score, expand, segsum]
    for li in range(n_mlp):
        in_specs.append(pl.BlockSpec(mlp_w[li].shape, lambda bb: (0, 0)))
        in_specs.append(pl.BlockSpec(mlp_b[li].shape, lambda bb: (0, 0)))
        args += [mlp_w[li], mlp_b[li]]

    out = pl.pallas_call(
        kernel,
        out_shape=jax.ShapeDtypeStruct((B_pad, d_out), jnp.float32),
        grid_spec=pltpu.PrefetchScalarGridSpec(
            num_scalar_prefetch=0,
            grid=(num_blocks,),
            in_specs=in_specs,
            out_specs=pl.BlockSpec((TB, d_out), lambda b: (b, 0)),
        ),
        compiler_params=pltpu.CompilerParams(
            dimension_semantics=("parallel",)),
    )(*args)
    return out[:B]                                            # (B, d_out)


# ----------------------------------------------------------------------------
# Pure-JAX reference (mirrors the PyTorch forward) for correctness checking.
# ----------------------------------------------------------------------------
def ltae_reference(x, positions, params, *, n_head, d_k, n_neurons,
                   max_temporal_shift, pe_table):
    B, T_seq, _ = x.shape
    d_model = params["w_in"].shape[1]
    d_head = d_model // n_head

    h = jnp.maximum(x @ params["w_in"] + params["b_in"], 0.0)
    e = h + jnp.take(pe_table, positions + max_temporal_shift, axis=0)

    k = (e @ params["w_k"] + params["b_k"]).reshape(B, T_seq, n_head, d_k)
    k = k.transpose(0, 2, 1, 3)                                     # (B, H, T, dk)
    q = jnp.broadcast_to(params["query"][None, :, None, :],
                         (B, n_head, 1, d_k))                       # (B, H, 1, dk)
    att = jnp.einsum("bhqd,bhtd->bhqt", q, k) / (float(d_k) ** 0.5)
    att = jax.nn.softmax(att, axis=-1)
    v = e.reshape(B, T_seq, n_head, d_head).transpose(0, 2, 1, 3)   # (B, H, T, dh)
    y = jnp.einsum("bhqt,bhtd->bhqd", att, v)                       # (B, H, 1, dh)
    y = y.transpose(0, 2, 1, 3).reshape(B, d_model)

    out = y
    for w, b in params["mlp"]:
        out = jnp.maximum(out @ w + b, 0.0)
    return out


# ----------------------------------------------------------------------------
# Deterministic parameter init (synthetic; PyTorch-like scales).
# ----------------------------------------------------------------------------
def init_params(key, in_channels, d_model, n_head, d_k, n_neurons):
    keys = jax.random.split(key, 3 + len(n_neurons))

    def lin(k, fan_in, fan_out):
        bound = 1.0 / (fan_in ** 0.5)
        kw, kb = jax.random.split(k)
        w = jax.random.uniform(kw, (fan_in, fan_out), jnp.float32, -bound, bound)
        b = jax.random.uniform(kb, (1, fan_out), jnp.float32, -bound, bound)
        return w, b

    w_in, b_in = lin(keys[0], in_channels, d_model)
    w_k, b_k = lin(keys[1], d_model, n_head * d_k)
    query = jax.random.normal(keys[2], (n_head, d_k), jnp.float32) * (2.0 / d_k) ** 0.5
    mlp = [lin(keys[3 + i], n_neurons[i], n_neurons[i + 1])
           for i in range(len(n_neurons) - 1)]
    return dict(w_in=w_in, b_in=b_in, w_k=w_k, b_k=b_k, query=query, mlp=mlp)


if __name__ == "__main__":
    # Small config consistent with the module (d_model == n_neurons[0]).
    B, T_seq = 24, 8
    in_channels, d_model = 32, 64
    n_head, d_k = 8, 8
    n_neurons = [64, 32]
    max_temporal_shift, max_position, period = 100, 365, 1000

    key = jax.random.PRNGKey(0)
    kx, kp, kparam = jax.random.split(key, 3)
    x = jax.random.normal(kx, (B, T_seq, in_channels), dtype=jnp.float32)
    positions = jax.random.randint(kp, (B, T_seq), 0, max_position, dtype=jnp.int32)

    params = init_params(kparam, in_channels, d_model, n_head, d_k, n_neurons)
    pe_table = get_positional_encoding(max_position + 2 * max_temporal_shift,
                                       d_model, T=period)

    # batch_tile=8 exercises a multi-step grid on this small example;
    # for production batches leave the default (128).
    run = functools.partial(ltae_forward, n_head=n_head, d_k=d_k,
                            n_neurons=n_neurons,
                            max_temporal_shift=max_temporal_shift,
                            pe_table=pe_table, batch_tile=8)
    out = jax.block_until_ready(run(x, positions, params))

    ref = ltae_reference(x, positions, params, n_head=n_head, d_k=d_k,
                         n_neurons=n_neurons,
                         max_temporal_shift=max_temporal_shift,
                         pe_table=pe_table)

    assert out.shape == (B, n_neurons[-1])
    assert bool(jnp.all(jnp.isfinite(out)))
    assert jnp.allclose(out, ref, rtol=5e-2, atol=5e-2)
    print("KERNEL_OK")
</pallas_src>

<mosaic_0001>
module attributes {stable_mosaic.version = 11 : i64} {
  func.func @kernel(%arg0: i32, %arg1: memref<64x32xbf16, #tpu.memory_space<vmem>>, %arg2: memref<64x64xbf16, #tpu.memory_space<vmem>>, %arg3: memref<32x64xbf16, #tpu.memory_space<vmem>>, %arg4: memref<1x64xf32, #tpu.memory_space<vmem>>, %arg5: memref<64x8xbf16, #tpu.memory_space<vmem>>, %arg6: memref<1x8xf32, #tpu.memory_space<vmem>>, %arg7: memref<8x64xf32, #tpu.memory_space<vmem>>, %arg8: memref<8x64xf32, #tpu.memory_space<vmem>>, %arg9: memref<64x32xbf16, #tpu.memory_space<vmem>>, %arg10: memref<1x32xf32, #tpu.memory_space<vmem>>, %arg11: memref<8x32xf32, #tpu.memory_space<vmem>>) attributes {dimension_semantics = [#tpu.dimension_semantics<parallel>], iteration_bounds = array<i64: 3>, scalar_prefetch = 0 : i64, scratch_operands = 0 : i64, tpu.core_type = #tpu.core_type<tc>, window_params = [{transform_indices = @transform_0, window_bounds = array<i64: 64, 32>}, {transform_indices = @transform_1, window_bounds = array<i64: 64, 64>}, {pipeline_mode = #tpu.pipeline_mode<synchronous>, transform_indices = @transform_2, window_bounds = array<i64: 32, 64>}, {pipeline_mode = #tpu.pipeline_mode<synchronous>, transform_indices = @transform_3, window_bounds = array<i64: 1, 64>}, {pipeline_mode = #tpu.pipeline_mode<synchronous>, transform_indices = @transform_4, window_bounds = array<i64: 64, 8>}, {pipeline_mode = #tpu.pipeline_mode<synchronous>, transform_indices = @transform_5, window_bounds = array<i64: 1, 8>}, {pipeline_mode = #tpu.pipeline_mode<synchronous>, transform_indices = @transform_6, window_bounds = array<i64: 8, 64>}, {pipeline_mode = #tpu.pipeline_mode<synchronous>, transform_indices = @transform_7, window_bounds = array<i64: 8, 64>}, {pipeline_mode = #tpu.pipeline_mode<synchronous>, transform_indices = @transform_8, window_bounds = array<i64: 64, 32>}, {pipeline_mode = #tpu.pipeline_mode<synchronous>, transform_indices = @transform_9, window_bounds = array<i64: 1, 32>}, {transform_indices = @transform_10, window_bounds = array<i64: 8, 32>}]} {
    %c0 = arith.constant 0 : index
    %c0_0 = arith.constant 0 : index
    %0 = vector.load %arg1[%c0, %c0_0] : memref<64x32xbf16, #tpu.memory_space<vmem>>, vector<64x32xbf16>
    %c0_1 = arith.constant 0 : index
    %c0_2 = arith.constant 0 : index
    %1 = vector.load %arg3[%c0_1, %c0_2] : memref<32x64xbf16, #tpu.memory_space<vmem>>, vector<32x64xbf16>
    %cst = arith.constant dense<0.000000e+00> : vector<64x64xf32>
    %2 = tpu.matmul %0, %1, %cst {dimension_numbers = #tpu.dot_dimension_numbers<[1], [0], [0], [1], [0, 0, 1, 1], [], []>} : vector<64x32xbf16>, vector<32x64xbf16>, vector<64x64xf32> -> vector<64x64xf32>
    %c0_3 = arith.constant 0 : index
    %c0_4 = arith.constant 0 : index
    %3 = vector.load %arg4[%c0_3, %c0_4] : memref<1x64xf32, #tpu.memory_space<vmem>>, vector<1x64xf32>
    %4 = vector.broadcast %3 : vector<1x64xf32> to vector<64x64xf32>
    %5 = arith.addf %2, %4 : vector<64x64xf32>
    %cst_5 = arith.constant 0.000000e+00 : f32
    %6 = vector.broadcast %cst_5 : f32 to vector<64x64xf32>
    %7 = arith.maximumf %5, %6 : vector<64x64xf32>
    %c0_6 = arith.constant 0 : index
    %c0_7 = arith.constant 0 : index
    %8 = vector.load %arg2[%c0_6, %c0_7] : memref<64x64xbf16, #tpu.memory_space<vmem>>, vector<64x64xbf16>
    %9 = arith.extf %8 : vector<64x64xbf16> to vector<64x64xf32>
    %10 = arith.addf %7, %9 : vector<64x64xf32>
    %11 = arith.truncf %10 : vector<64x64xf32> to vector<64x64xbf16>
    %c0_8 = arith.constant 0 : index
    %c0_9 = arith.constant 0 : index
    %12 = vector.load %arg5[%c0_8, %c0_9] : memref<64x8xbf16, #tpu.memory_space<vmem>>, vector<64x8xbf16>
    %cst_10 = arith.constant dense<0.000000e+00> : vector<64x8xf32>
    %13 = tpu.matmul %11, %12, %cst_10 {dimension_numbers = #tpu.dot_dimension_numbers<[1], [0], [0], [1], [0, 0, 1, 1], [], []>} : vector<64x64xbf16>, vector<64x8xbf16>, vector<64x8xf32> -> vector<64x8xf32>
    %c0_11 = arith.constant 0 : index
    %c0_12 = arith.constant 0 : index
    %14 = vector.load %arg6[%c0_11, %c0_12] : memref<1x8xf32, #tpu.memory_space<vmem>>, vector<1x8xf32>
    %15 = vector.broadcast %14 : vector<1x8xf32> to vector<64x8xf32>
    %16 = arith.addf %13, %15 : vector<64x8xf32>
    %cst_13 = arith.constant dense<0xFF800000> : vector<8xf32>
    %17 = vector.multi_reduction <maximumf>, %16, %cst_13 [0] : vector<64x8xf32> to vector<8xf32>
    %18 = vector.shape_cast %17 : vector<8xf32> to vector<1x8xf32>
    %19 = vector.broadcast %18 : vector<1x8xf32> to vector<64x8xf32>
    %20 = arith.subf %16, %19 : vector<64x8xf32>
    %21 = math.exp %20 : vector<64x8xf32>
    %c0_14 = arith.constant 0 : index
    %c0_15 = arith.constant 0 : index
    %22 = vector.load %arg7[%c0_14, %c0_15] : memref<8x64xf32, #tpu.memory_space<vmem>>, vector<8x64xf32>
    %cst_16 = arith.constant dense<0.000000e+00> : vector<64x64xf32>
    %23 = tpu.matmul %21, %22, %cst_16 {dimension_numbers = #tpu.dot_dimension_numbers<[1], [0], [0], [1], [0, 0, 1, 1], [], []>} : vector<64x8xf32>, vector<8x64xf32>, vector<64x64xf32> -> vector<64x64xf32>
    %c0_17 = arith.constant 0 : index
    %c0_18 = arith.constant 0 : index
    %24 = vector.load %arg8[%c0_17, %c0_18] : memref<8x64xf32, #tpu.memory_space<vmem>>, vector<8x64xf32>
    %25 = arith.mulf %23, %10 : vector<64x64xf32>
    %cst_19 = arith.constant dense<0.000000e+00> : vector<8x64xf32>
    %26 = tpu.matmul %24, %25, %cst_19 {dimension_numbers = #tpu.dot_dimension_numbers<[1], [0], [0], [1], [0, 0, 1, 1], [], []>} : vector<8x64xf32>, vector<64x64xf32>, vector<8x64xf32> -> vector<8x64xf32>
    %c0_20 = arith.constant 0 : index
    %c0_21 = arith.constant 0 : index
    %27 = vector.load %arg8[%c0_20, %c0_21] : memref<8x64xf32, #tpu.memory_space<vmem>>, vector<8x64xf32>
    %cst_22 = arith.constant dense<0.000000e+00> : vector<8x64xf32>
    %28 = tpu.matmul %27, %23, %cst_22 {dimension_numbers = #tpu.dot_dimension_numbers<[1], [0], [0], [1], [0, 0, 1, 1], [], []>} : vector<8x64xf32>, vector<64x64xf32>, vector<8x64xf32> -> vector<8x64xf32>
    %cst_23 = arith.constant 1.000000e-30 : f32
    %29 = vector.broadcast %cst_23 : f32 to vector<8x64xf32>
    %30 = arith.maximumf %28, %29 : vector<8x64xf32>
    %31 = tpu.reciprocal %30 {approx = true} : vector<8x64xf32> -> vector<8x64xf32>
    %32 = arith.mulf %26, %31 : vector<8x64xf32>
    %c0_24 = arith.constant 0 : index
    %c0_25 = arith.constant 0 : index
    %33 = vector.load %arg9[%c0_24, %c0_25] : memref<64x32xbf16, #tpu.memory_space<vmem>>, vector<64x32xbf16>
    %c0_26 = arith.constant 0 : index
    %c0_27 = arith.constant 0 : index
    %34 = vector.load %arg10[%c0_26, %c0_27] : memref<1x32xf32, #tpu.memory_space<vmem>>, vector<1x32xf32>
    %35 = arith.truncf %32 : vector<8x64xf32> to vector<8x64xbf16>
    %cst_28 = arith.constant dense<0.000000e+00> : vector<8x32xf32>
    %36 = tpu.matmul %35, %33, %cst_28 {dimension_numbers = #tpu.dot_dimension_numbers<[1], [0], [0], [1], [0, 0, 1, 1], [], []>} : vector<8x64xbf16>, vector<64x32xbf16>, vector<8x32xf32> -> vector<8x32xf32>
    %37 = vector.broadcast %34 : vector<1x32xf32> to vector<8x32xf32>
    %38 = arith.addf %36, %37 : vector<8x32xf32>
    %cst_29 = arith.constant 0.000000e+00 : f32
    %39 = vector.broadcast %cst_29 : f32 to vector<8x32xf32>
    %40 = arith.maximumf %38, %39 : vector<8x32xf32>
    %c0_30 = arith.constant 0 : index
    %c0_31 = arith.constant 0 : index
    %41 = vector.load %arg11[%c0_30, %c0_31] : memref<8x32xf32, #tpu.memory_space<vmem>>, vector<8x32xf32>
    tpu.vector_store %arg11[%c0_30, %c0_31], %40 {strides = array<i32>} : memref<8x32xf32, #tpu.memory_space<vmem>>, vector<8x32xf32>,
    return
  }
  func.func @transform_0(%arg0: i32) -> (i32, i32) {
    %c0_i32 = arith.constant 0 : i32
    %c0_i32_0 = arith.constant 0 : i32
    return %arg0, %c0_i32 : i32, i32
  }
  func.func @transform_1(%arg0: i32) -> (i32, i32) {
    %c0_i32 = arith.constant 0 : i32
    %c0_i32_0 = arith.constant 0 : i32
    return %arg0, %c0_i32 : i32, i32
  }
  func.func @transform_2(%arg0: i32) -> (i32, i32) {
    %c0_i32 = arith.constant 0 : i32
    %c0_i32_0 = arith.constant 0 : i32
    %c0_i32_1 = arith.constant 0 : i32
    return %c0_i32, %c0_i32_0 : i32, i32
  }
  func.func @transform_3(%arg0: i32) -> (i32, i32) {
    %c0_i32 = arith.constant 0 : i32
    %c0_i32_0 = arith.constant 0 : i32
    %c0_i32_1 = arith.constant 0 : i32
    return %c0_i32, %c0_i32_0 : i32, i32
  }
  func.func @transform_4(%arg0: i32) -> (i32, i32) {
    %c0_i32 = arith.constant 0 : i32
    %c0_i32_0 = arith.constant 0 : i32
    %c0_i32_1 = arith.constant 0 : i32
    return %c0_i32, %c0_i32_0 : i32, i32
  }
  func.func @transform_5(%arg0: i32) -> (i32, i32) {
    %c0_i32 = arith.constant 0 : i32
    %c0_i32_0 = arith.constant 0 : i32
    %c0_i32_1 = arith.constant 0 : i32
    return %c0_i32, %c0_i32_0 : i32, i32
  }
  func.func @transform_6(%arg0: i32) -> (i32, i32) {
    %c0_i32 = arith.constant 0 : i32
    %c0_i32_0 = arith.constant 0 : i32
    %c0_i32_1 = arith.constant 0 : i32
    return %c0_i32, %c0_i32_0 : i32, i32
  }
  func.func @transform_7(%arg0: i32) -> (i32, i32) {
    %c0_i32 = arith.constant 0 : i32
    %c0_i32_0 = arith.constant 0 : i32
    %c0_i32_1 = arith.constant 0 : i32
    return %c0_i32, %c0_i32_0 : i32, i32
  }
  func.func @transform_8(%arg0: i32) -> (i32, i32) {
    %c0_i32 = arith.constant 0 : i32
    %c0_i32_0 = arith.constant 0 : i32
    %c0_i32_1 = arith.constant 0 : i32
    return %c0_i32, %c0_i32_0 : i32, i32
  }
  func.func @transform_9(%arg0: i32) -> (i32, i32) {
    %c0_i32 = arith.constant 0 : i32
    %c0_i32_0 = arith.constant 0 : i32
    %c0_i32_1 = arith.constant 0 : i32
    return %c0_i32, %c0_i32_0 : i32, i32
  }
  func.func @transform_10(%arg0: i32) -> (i32, i32) {
    %c0_i32 = arith.constant 0 : i32
    %c0_i32_0 = arith.constant 0 : i32
    return %arg0, %c0_i32 : i32, i32
  }
}

</mosaic_0001>

<llo_original>
// kernel: tpu_custom_call.1
$region0: #{tpu_custom_call.1}
  #allocation0 [shape = 'u32[]', space=smem, size = 0x4, offset = 0x4, fixed_abs, tag = 'smem constant byte address 0x4 - core index']
  #allocation1 [shape = 'u32[144,128]{1,0:T(1,128)}', space=vmem, size = 0x12000, scoped, tag = 'internal scratch']
  %s0 = inlined_call_operand.vmem [shape: bf16[192,32], index: 0, kind: input, shape index: {}]
  %s1 = inlined_call_operand.vmem [shape: bf16[192,64], index: 1, kind: input, shape index: {}]
  %s2 = inlined_call_operand.vmem [shape: bf16[32,64], index: 2, kind: input, shape index: {}]
  %s3 = inlined_call_operand.vmem [shape: f32[1,64], index: 3, kind: input, shape index: {}]
  %s4 = inlined_call_operand.vmem [shape: bf16[64,8], index: 4, kind: input, shape index: {}]
  %s5 = inlined_call_operand.vmem [shape: f32[1,8], index: 5, kind: input, shape index: {}]
  %s6 = inlined_call_operand.vmem [shape: f32[8,64], index: 6, kind: input, shape index: {}]
  %s7 = inlined_call_operand.vmem [shape: f32[8,64], index: 7, kind: input, shape index: {}]
  %s8 = inlined_call_operand.vmem [shape: bf16[64,32], index: 8, kind: input, shape index: {}]
  %s9 = inlined_call_operand.vmem [shape: f32[1,32], index: 9, kind: input, shape index: {}]
  %s10 = inlined_call_operand.hbm [shape: f32[24,32], index: 10, kind: output, shape index: {}]
  %s11 = sld [smem:[#allocation0]]
  $region73: #{tpu_custom_call.1} parent=0
    _
  %s13 = ssub.s32 1, %s11
  %s14 = scalar_select 0, %s13, %s11
  $region1: #{tpu_custom_call.1} parent=0
    #allocation2 [shape = 'u8[8192]{0}', space=vmem, size = 0x2000, scoped, tag = 'output window, operand 0']
    #allocation3 [shape = 's32[2]{0}', space=sflag, size = 0x8, scoped, tag = 'scoped memory for tpu_custom_call.1']
    %15 = vsyncpa [#allocation3], 0
    %s16 = scalar_lea.sflag [#allocation3], 1
    %17 = vsyncpa %s16, 0
    loop: start=0, step=1, limit=5
    $region2: #{tpu_custom_call.1} parent=1 // loop_pre_header
      _
    $region3: #{tpu_custom_call.1} parent=1 // loop_header
      %s19 = sphi 0, %s23
      %p20 = scmp.ge.s32.totalorder %s19, 5
      %s29 = sphi 0, %s31
      %s32 = sphi 0, %s29
      %s33 = sphi 0, %s32
      %s49 = sphi 0, %s33
      %s55 = sphi 0, %s57
      %s58 = sphi 0, %s55
      %s59 = sphi 0, %s58
      %s75 = sphi 0, %s59
      %s79 = sphi 0, %s79
      %s81 = sphi 0, %s79
      %s82 = sphi 0, %s81
      %s96 = sphi 0, %s82
      %s100 = sphi 0, %s100
      %s102 = sphi 0, %s100
      %s103 = sphi 0, %s102
      %s117 = sphi 0, %s103
      %s121 = sphi 0, %s121
      %s123 = sphi 0, %s121
      %s124 = sphi 0, %s123
      %s138 = sphi 0, %s124
      %s142 = sphi 0, %s142
      %s144 = sphi 0, %s142
      %s145 = sphi 0, %s144
      %s159 = sphi 0, %s145
      %s163 = sphi 0, %s163
      %s165 = sphi 0, %s163
      %s166 = sphi 0, %s165
      %s180 = sphi 0, %s166
      %s184 = sphi 0, %s184
      %s186 = sphi 0, %s184
      %s187 = sphi 0, %s186
      %s201 = sphi 0, %s187
      %s205 = sphi 0, %s205
      %s207 = sphi 0, %s205
      %s208 = sphi 0, %s207
      %s222 = sphi 0, %s208
      %s226 = sphi 0, %s226
      %s228 = sphi 0, %s226
      %s229 = sphi 0, %s228
      %s243 = sphi 0, %s229
      %s249 = sphi 0, %s251
      %s252 = sphi 0, %s249
      %s253 = sphi 0, %s252
      %s269 = sphi 0, %s253
    $region4: #{tpu_custom_call.1} parent=1 // loop_header_branch
      %22 = sbr.rel (%p20) target = $region8
    $region5: #{tpu_custom_call.1} parent=1 // loop_body
      %s24 = ssub.s32 %s19, 1
      %s25 = ssub.s32 %s19, 2
      %s26 = sadd.s32 %s19, 1
      %s27 = ssub.s32 %s19, %s26
      %p28 = scmp.eq.s32.totalorder %s27, 0
      %s30 = sadd.s32 %s29, 1
      %s31 = scalar_select %p28, %s29, %s30
      %p34 = pneg %p28
      %p35 = scmp.eq.s32.totalorder %s19, 2
      %p36 = por %p34, %p35
      %p37 = scmp.ne.s32.totalorder %s29, %s32
      %p38 = scmp.eq.s32.totalorder %s19, 0
      %p39 = por %p37, %p38
      %p40 = scmp.ne.s32.totalorder %s29, %s32
      %p41 = scmp.eq.s32.totalorder %s24, 2
      %p42 = por %p40, %p41
      %p43 = scmp.ne.s32.totalorder %s32, %s33
      %p44 = scmp.eq.s32.totalorder %s24, 0
      %p45 = por %p43, %p44
      %p46 = scmp.ne.s32.totalorder %s32, %s33
      %p47 = scmp.eq.s32.totalorder %s25, 2
      %p48 = por %p46, %p47
      %p50 = scmp.ne.s32.totalorder %s33, %s49
      %p51 = scmp.eq.s32.totalorder %s25, 0
      %p52 = por %p50, %p51
      %s53 = ssub.s32 %s19, %s26
      %p54 = scmp.eq.s32.totalorder %s53, 0
      %s56 = sadd.s32 %s55, 1
      %s57 = scalar_select %p54, %s55, %s56
      %p60 = pneg %p54
      %p61 = scmp.eq.s32.totalorder %s19, 2
      %p62 = por %p60, %p61
      %p63 = scmp.ne.s32.totalorder %s55, %s58
      %p64 = scmp.eq.s32.totalorder %s19, 0
      %p65 = por %p63, %p64
      %p66 = scmp.ne.s32.totalorder %s55, %s58
      %p67 = scmp.eq.s32.totalorder %s24, 2
      %p68 = por %p66, %p67
      %p69 = scmp.ne.s32.totalorder %s58, %s59
      %p70 = scmp.eq.s32.totalorder %s24, 0
      %p71 = por %p69, %p70
      %p72 = scmp.ne.s32.totalorder %s58, %s59
      %p73 = scmp.eq.s32.totalorder %s25, 2
      %p74 = por %p72, %p73
      %p76 = scmp.ne.s32.totalorder %s59, %s75
      %p77 = scmp.eq.s32.totalorder %s25, 0
      %p78 = por %p76, %p77
      %s80 = sadd.s32 %s79, 1
      %p83 = scmp.eq.s32.totalorder %s19, 2
      %p84 = scmp.ne.s32.totalorder %s79, %s81
      %p85 = scmp.eq.s32.totalorder %s19, 0
      %p86 = por %p84, %p85
      %p87 = scmp.ne.s32.totalorder %s79, %s81
      %p88 = scmp.eq.s32.totalorder %s24, 2
      %p89 = por %p87, %p88
      %p90 = scmp.ne.s32.totalorder %s81, %s82
      %p91 = scmp.eq.s32.totalorder %s24, 0
      %p92 = por %p90, %p91
      %p93 = scmp.ne.s32.totalorder %s81, %s82
      %p94 = scmp.eq.s32.totalorder %s25, 2
      %p95 = por %p93, %p94
      %p97 = scmp.ne.s32.totalorder %s82, %s96
      %p98 = scmp.eq.s32.totalorder %s25, 0
      %p99 = por %p97, %p98
      %s101 = sadd.s32 %s100, 1
      %p104 = scmp.eq.s32.totalorder %s19, 2
      %p105 = scmp.ne.s32.totalorder %s100, %s102
      %p106 = scmp.eq.s32.totalorder %s19, 0
      %p107 = por %p105, %p106
      %p108 = scmp.ne.s32.totalorder %s100, %s102
      %p109 = scmp.eq.s32.totalorder %s24, 2
      %p110 = por %p108, %p109
      %p111 = scmp.ne.s32.totalorder %s102, %s103
      %p112 = scmp.eq.s32.totalorder %s24, 0
      %p113 = por %p111, %p112
      %p114 = scmp.ne.s32.totalorder %s102, %s103
      %p115 = scmp.eq.s32.totalorder %s25, 2
      %p116 = por %p114, %p115
      %p118 = scmp.ne.s32.totalorder %s103, %s117
      %p119 = scmp.eq.s32.totalorder %s25, 0
      %p120 = por %p118, %p119
      %s122 = sadd.s32 %s121, 1
      %p125 = scmp.eq.s32.totalorder %s19, 2
      %p126 = scmp.ne.s32.totalorder %s121, %s123
      %p127 = scmp.eq.s32.totalorder %s19, 0
      %p128 = por %p126, %p127
      %p129 = scmp.ne.s32.totalorder %s121, %s123
      %p130 = scmp.eq.s32.totalorder %s24, 2
      %p131 = por %p129, %p130
      %p132 = scmp.ne.s32.totalorder %s123, %s124
      %p133 = scmp.eq.s32.totalorder %s24, 0
      %p134 = por %p132, %p133
      %p135 = scmp.ne.s32.totalorder %s123, %s124
      %p136 = scmp.eq.s32.totalorder %s25, 2
      %p137 = por %p135, %p136
      %p139 = scmp.ne.s32.totalorder %s124, %s138
      %p140 = scmp.eq.s32.totalorder %s25, 0
      %p141 = por %p139, %p140
      %s143 = sadd.s32 %s142, 1
      %p146 = scmp.eq.s32.totalorder %s19, 2
      %p147 = scmp.ne.s32.totalorder %s142, %s144
      %p148 = scmp.eq.s32.totalorder %s19, 0
      %p149 = por %p147, %p148
      %p150 = scmp.ne.s32.totalorder %s142, %s144
      %p151 = scmp.eq.s32.totalorder %s24, 2
      %p152 = por %p150, %p151
      %p153 = scmp.ne.s32.totalorder %s144, %s145
      %p154 = scmp.eq.s32.totalorder %s24, 0
      %p155 = por %p153, %p154
      %p156 = scmp.ne.s32.totalorder %s144, %s145
      %p157 = scmp.eq.s32.totalorder %s25, 2
      %p158 = por %p156, %p157
      %p160 = scmp.ne.s32.totalorder %s145, %s159
      %p161 = scmp.eq.s32.totalorder %s25, 0
      %p162 = por %p160, %p161
      %s164 = sadd.s32 %s163, 1
      %p167 = scmp.eq.s32.totalorder %s19, 2
      %p168 = scmp.ne.s32.totalorder %s163, %s165
      %p169 = scmp.eq.s32.totalorder %s19, 0
      %p170 = por %p168, %p169
      %p171 = scmp.ne.s32.totalorder %s163, %s165
      %p172 = scmp.eq.s32.totalorder %s24, 2
      %p173 = por %p171, %p172
      %p174 = scmp.ne.s32.totalorder %s165, %s166
      %p175 = scmp.eq.s32.totalorder %s24, 0
      %p176 = por %p174, %p175
      %p177 = scmp.ne.s32.totalorder %s165, %s166
      %p178 = scmp.eq.s32.totalorder %s25, 2
      %p179 = por %p177, %p178
      %p181 = scmp.ne.s32.totalorder %s166, %s180
      %p182 = scmp.eq.s32.totalorder %s25, 0
      %p183 = por %p181, %p182
      %s185 = sadd.s32 %s184, 1
      %p188 = scmp.eq.s32.totalorder %s19, 2
      %p189 = scmp.ne.s32.totalorder %s184, %s186
      %p190 = scmp.eq.s32.totalorder %s19, 0
      %p191 = por %p189, %p190
      %p192 = scmp.ne.s32.totalorder %s184, %s186
      %p193 = scmp.eq.s32.totalorder %s24, 2
      %p194 = por %p192, %p193
      %p195 = scmp.ne.s32.totalorder %s186, %s187
      %p196 = scmp.eq.s32.totalorder %s24, 0
      %p197 = por %p195, %p196
      %p198 = scmp.ne.s32.totalorder %s186, %s187
      %p199 = scmp.eq.s32.totalorder %s25, 2
      %p200 = por %p198, %p199
      %p202 = scmp.ne.s32.totalorder %s187, %s201
      %p203 = scmp.eq.s32.totalorder %s25, 0
      %p204 = por %p202, %p203
      %s206 = sadd.s32 %s205, 1
      %p209 = scmp.eq.s32.totalorder %s19, 2
      %p210 = scmp.ne.s32.totalorder %s205, %s207
      %p211 = scmp.eq.s32.totalorder %s19, 0
      %p212 = por %p210, %p211
      %p213 = scmp.ne.s32.totalorder %s205, %s207
      %p214 = scmp.eq.s32.totalorder %s24, 2
      %p215 = por %p213, %p214
      %p216 = scmp.ne.s32.totalorder %s207, %s208
      %p217 = scmp.eq.s32.totalorder %s24, 0
      %p218 = por %p216, %p217
      %p219 = scmp.ne.s32.totalorder %s207, %s208
      %p220 = scmp.eq.s32.totalorder %s25, 2
      %p221 = por %p219, %p220
      %p223 = scmp.ne.s32.totalorder %s208, %s222
      %p224 = scmp.eq.s32.totalorder %s25, 0
      %p225 = por %p223, %p224
      %s227 = sadd.s32 %s226, 1
      %p230 = scmp.eq.s32.totalorder %s19, 2
      %p231 = scmp.ne.s32.totalorder %s226, %s228
      %p232 = scmp.eq.s32.totalorder %s19, 0
      %p233 = por %p231, %p232
      %p234 = scmp.ne.s32.totalorder %s226, %s228
      %p235 = scmp.eq.s32.totalorder %s24, 2
      %p236 = por %p234, %p235
      %p237 = scmp.ne.s32.totalorder %s228, %s229
      %p238 = scmp.eq.s32.totalorder %s24, 0
      %p239 = por %p237, %p238
      %p240 = scmp.ne.s32.totalorder %s228, %s229
      %p241 = scmp.eq.s32.totalorder %s25, 2
      %p242 = por %p240, %p241
      %p244 = scmp.ne.s32.totalorder %s229, %s243
      %p245 = scmp.eq.s32.totalorder %s25, 0
      %p246 = por %p244, %p245
      %s247 = ssub.s32 %s19, %s26
      %p248 = scmp.eq.s32.totalorder %s247, 0
      %s250 = sadd.s32 %s249, 1
      %s251 = scalar_select %p248, %s249, %s250
      %p254 = pneg %p248
      %p255 = scmp.eq.s32.totalorder %s19, 2
      %p256 = por %p254, %p255
      %p257 = scmp.ne.s32.totalorder %s249, %s252
      %p258 = scmp.eq.s32.totalorder %s19, 0
      %p259 = por %p257, %p258
      %p260 = scmp.ne.s32.totalorder %s249, %s252
      %p261 = scmp.eq.s32.totalorder %s24, 2
      %p262 = por %p260, %p261
      %p263 = scmp.ne.s32.totalorder %s252, %s253
      %p264 = scmp.eq.s32.totalorder %s24, 0
      %p265 = por %p263, %p264
      %p266 = scmp.ne.s32.totalorder %s252, %s253
      %p267 = scmp.eq.s32.totalorder %s25, 2
      %p268 = por %p266, %p267
      %p270 = scmp.ne.s32.totalorder %s253, %s269
      %p271 = scmp.eq.s32.totalorder %s25, 0
      %p272 = por %p270, %p271
      %p273 = scmp.le.s32.totalorder 1, %s19
      %p274 = scmp.lt.s32.totalorder %s19, 4
      %p275 = pnand %p273, %p274
      %p276 = pneg %p275
      // Predicated region
      $region9: #{tpu_custom_call.1} parent=5 // pred_check
        _
      $region10: #{tpu_custom_call.1} parent=5 // pred_check_branch
        %278 = sbr.rel (%p275) target = $region12
      $region11: #{tpu_custom_call.1} parent=5 // pred_region
        %s279 = ssub.s32 %s19, 1
        // Predicated region
        $region13: #{tpu_custom_call.1} parent=11 // pred_check
          %p280 = pneg %p92
        $region14: #{tpu_custom_call.1} parent=11 // pred_check_branch
          %282 = sbr.rel (%p280) target = $region16
        $region15: #{tpu_custom_call.1} parent=11 // pred_region
          _
        $region16: #{tpu_custom_call.1} parent=11 // pred_fallthru
          _
        // Predicated region
        $region17: #{tpu_custom_call.1} parent=11 // pred_check
          %p283 = pneg %p113
        $region18: #{tpu_custom_call.1} parent=11 // pred_check_branch
          %285 = sbr.rel (%p283) target = $region20
        $region19: #{tpu_custom_call.1} parent=11 // pred_region
          _
        $region20: #{tpu_custom_call.1} parent=11 // pred_fallthru
          _
        // Predicated region
        $region21: #{tpu_custom_call.1} parent=11 // pred_check
          %p286 = pneg %p134
        $region22: #{tpu_custom_call.1} parent=11 // pred_check_branch
          %288 = sbr.rel (%p286) target = $region24
        $region23: #{tpu_custom_call.1} parent=11 // pred_region
          _
        $region24: #{tpu_custom_call.1} parent=11 // pred_fallthru
          _
        // Predicated region
        $region25: #{tpu_custom_call.1} parent=11 // pred_check
          %p289 = pneg %p155
        $region26: #{tpu_custom_call.1} parent=11 // pred_check_branch
          %291 = sbr.rel (%p289) target = $region28
        $region27: #{tpu_custom_call.1} parent=11 // pred_region
          _
        $region28: #{tpu_custom_call.1} parent=11 // pred_fallthru
          _
        // Predicated region
        $region29: #{tpu_custom_call.1} parent=11 // pred_check
          %p292 = pneg %p176
        $region30: #{tpu_custom_call.1} parent=11 // pred_check_branch
          %294 = sbr.rel (%p292) target = $region32
        $region31: #{tpu_custom_call.1} parent=11 // pred_region
          _
        $region32: #{tpu_custom_call.1} parent=11 // pred_fallthru
          _
        // Predicated region
        $region33: #{tpu_custom_call.1} parent=11 // pred_check
          %p295 = pneg %p197
        $region34: #{tpu_custom_call.1} parent=11 // pred_check_branch
          %297 = sbr.rel (%p295) target = $region36
        $region35: #{tpu_custom_call.1} parent=11 // pred_region
          _
        $region36: #{tpu_custom_call.1} parent=11 // pred_fallthru
          _
        // Predicated region
        $region37: #{tpu_custom_call.1} parent=11 // pred_check
          %p298 = pneg %p218
        $region38: #{tpu_custom_call.1} parent=11 // pred_check_branch
          %300 = sbr.rel (%p298) target = $region40
        $region39: #{tpu_custom_call.1} parent=11 // pred_region
          _
        $region40: #{tpu_custom_call.1} parent=11 // pred_fallthru
          _
        // Predicated region
        $region41: #{tpu_custom_call.1} parent=11 // pred_check
          %p301 = pneg %p239
        $region42: #{tpu_custom_call.1} parent=11 // pred_check_branch
          %303 = sbr.rel (%p301) target = $region44
        $region43: #{tpu_custom_call.1} parent=11 // pred_region
          _
        $region44: #{tpu_custom_call.1} parent=11 // pred_fallthru
          _
      $region12: #{tpu_custom_call.1} parent=5 // pred_fallthru
        _
      %p304 = scmp.lt.s32.totalorder %s19, 3
      // Predicated region
      $region45: #{tpu_custom_call.1} parent=5 // pred_check
        %p305 = pneg %p304
      $region46: #{tpu_custom_call.1} parent=5 // pred_check_branch
        %307 = sbr.rel (%p305) target = $region48
      $region47: #{tpu_custom_call.1} parent=5 // pred_region
        // Predicated region
        $region49: #{tpu_custom_call.1} parent=47 // pred_check
          %p308 = pneg %p39
        $region50: #{tpu_custom_call.1} parent=47 // pred_check_branch
          %310 = sbr.rel (%p308) target = $region52
        $region51: #{tpu_custom_call.1} parent=47 // pred_region
          %s311 = smul.u32 8, %s19
          %p312 = scmp.lt.s32.totalorder %s311, 23
          %s313 = scalar_select %p312, %s311, 23
          %s314 = smul.addr %s313, 4
          %s315 = scalar_lea.vmem %s0, %s314
          %s316 = smul.u32 8, %s19
        $region52: #{tpu_custom_call.1} parent=47 // pred_fallthru
          _
        // Predicated region
        $region53: #{tpu_custom_call.1} parent=47 // pred_check
          %p317 = pneg %p65
        $region54: #{tpu_custom_call.1} parent=47 // pred_check_branch
          %319 = sbr.rel (%p317) target = $region56
        $region55: #{tpu_custom_call.1} parent=47 // pred_region
          %s320 = smul.u32 8, %s19
          %p321 = scmp.lt.s32.totalorder %s320, 23
          %s322 = scalar_select %p321, %s320, 23
          %s323 = smul.addr %s322, 4
          %s324 = scalar_lea.vmem %s1, %s323
          %s325 = smul.u32 8, %s19
        $region56: #{tpu_custom_call.1} parent=47 // pred_fallthru
          _
      $region48: #{tpu_custom_call.1} parent=5 // pred_fallthru
        _
      %p326 = scmp.le.s32.totalorder 1, %s19
      %p327 = scmp.lt.s32.totalorder %s19, 4
      %p328 = pnand %p326, %p327
      %p329 = pneg %p328
      // Predicated region
      $region57: #{tpu_custom_call.1} parent=5 // pred_check
        _
      $region58: #{tpu_custom_call.1} parent=5 // pred_check_branch
        %331 = sbr.rel (%p328) target = $region60
      $region59: #{tpu_custom_call.1} parent=5 // pred_region
        %s332 = ssub.s32 %s19, 1
        %s333 = smul.u32 8, %s24
        %p334 = scmp.lt.s32.totalorder %s333, 23
        %s335 = scalar_select %p334, %s333, 23
        %s336 = smul.addr %s335, 4
        %s337 = scalar_lea.vmem %s0, %s336
        %p338 = pneg %p45
        %p339 = pneg %p42
        %s340 = smul.u32 8, %s24
        %p341 = scmp.lt.s32.totalorder %s340, 23
        %s342 = scalar_select %p341, %s340, 23
        %s343 = smul.addr %s342, 4
        %s344 = scalar_lea.vmem %s1, %s343
        %p345 = pneg %p71
        %p346 = pneg %p68
        %p347 = pneg %p92
        %p348 = pneg %p89
        %p349 = pneg %p113
        %p350 = pneg %p110
        %p351 = pneg %p134
        %p352 = pneg %p131
        %p353 = pneg %p155
        %p354 = pneg %p152
        %p355 = pneg %p176
        %p356 = pneg %p173
        %p357 = pneg %p197
        %p358 = pneg %p194
        %p359 = pneg %p218
        %p360 = pneg %p215
        %p361 = pneg %p239
        %p362 = pneg %p236
        %p363 = pneg %p265
        %p364 = pneg %p262
        %s365 = sand.u32 %s252, 1
        %s366 = scalar_lea.sflag [#allocation3], %s365
        %s367 = sand.u32 %s252, 1
        %s368 = smul.addr %s367, 8
        %s369 = scalar_lea.vmem [#allocation2], %s368
        %s370 = smul.u32 8, %s24
        %p371 = scmp.lt.s32.totalorder %s370, 23
        %s372 = scalar_select %p371, %s370, 23
        %s373 = smul.addr %s372, 4
        %s374 = scalar_lea.vmem %s0, %s373
        %s375 = smul.u32 8, %s24
        %s376 = smul.u32 8, %s24
        %p377 = scmp.lt.s32.totalorder %s376, 23
        %s378 = scalar_select %p377, %s376, 23
        %s379 = smul.addr %s378, 4
        %s380 = scalar_lea.vmem %s1, %s379
        %s381 = smul.u32 8, %s24
        %v383 = vld [vmem:[%s374] sm:$0xf]
        %v384 = vld [vmem:[%s374 + $0x4] sm:$0xf]
        %v385 = vld [vmem:[%s374 + $0x8] sm:$0xf]
        %v386 = vld [vmem:[%s374 + $0xc] sm:$0xf]
        %v387 = vld [vmem:[%s374 + $0x10] sm:$0xf]
        %v388 = vld [vmem:[%s374 + $0x14] sm:$0xf]
        %v389 = vld [vmem:[%s374 + $0x18] sm:$0xf]
        %v390 = vld [vmem:[%s374 + $0x1c] sm:$0xf]
        %v391 = vld [vmem:[%s2] sm:$0xf]
        %v392 = vld [vmem:[%s2 + $0x4] sm:$0xf]
        %v393 = vld [vmem:[%s2 + $0x8] sm:$0xf]
        %v394 = vld [vmem:[%s2 + $0xc] sm:$0xf]
        %v395 = vld [vmem:[%s3] sm:$0x1]
        %v397 = vlaneseq
        %v398 = vshrl.u32 %v397, 7
        %v399 = vsub.s32 0, %v398
        %v400 = vrot.slane %v395, %v399
        %v410 = vunpack.c.l.b16 %v383
        %v411 = vunpack.c.l.b16 %v384
        %v412 = vunpack.c.l.b16 %v385
        %v413 = vunpack.c.l.b16 %v386
        %v414 = vunpack.c.l.b16 %v387
        %v415 = vunpack.c.l.b16 %v388
        %v416 = vunpack.c.l.b16 %v389
        %v417 = vunpack.c.l.b16 %v390
        %v418 = vpack.c.b16 %v411, %v410
        %v419 = vpack.c.b16 %v413, %v412
        %v420 = vpack.c.b16 %v415, %v414
        %v421 = vpack.c.b16 %v417, %v416
        %v426 = vunpack.c.l.b16 %v391
        %v427 = vunpack.c.l.b16 %v392
        %v428 = vunpack.c.l.b16 %v393
        %v429 = vunpack.c.l.b16 %v394
        %v430 = vpack.c.b16 %v427, %v426
        %v431 = vpack.c.b16 %v429, %v428
        %vm434 = vcmask 261120
        %v436 = vsel %vm434, %v418, 0
        %v439 = vsel %vm434, %v419, 0
        %v442 = vsel %vm434, %v420, 0
        %v445 = vsel %vm434, %v421, 0
        %447 = vmatprep.subr.bf16.mxu0 0
        %448 = vmatpush1.bf16.msra.mxu0 0
        %449 = vmatprep.subr.bf16.mxu0 0
        %450 = vmatpush1.bf16.msra.mxu0 0
        %451 = vmatprep.subr.bf16.mxu0 0
        %452 = vmatpush1.bf16.msra.mxu0 0
        %453 = vmatprep.subr.bf16.mxu0 0
        %454 = vmatpush1.bf16.msra.mxu0 0
        %455 = vmatprep.subr.bf16.mxu0 0
        %456 = vmatpush1.bf16.msra.mxu0 0
        %457 = vmatprep.subr.bf16.mxu0 0
        %458 = vmatpush1.bf16.msra.mxu0 0
        %459 = vmatprep.subr.bf16.mxu0 0
        %460 = vmatpush1.bf16.msra.mxu0 %v431
        %461 = vmatprep.subr.bf16.mxu0 0
        %462 = vmatpush1.bf16.msra.mxu0 %v430
        %463 = vmatprep.subr.bf16.mxu0 0
        %464 = vmatpush2.bf16.msra.mxu0 0
        %465 = vmatprep.subr.bf16.mxu0 0
        %466 = vmatpush2.bf16.msra.mxu0 0
        %467 = vmatprep.subr.bf16.mxu0 0
        %468 = vmatpush2.bf16.msra.mxu0 0
        %469 = vmatprep.subr.bf16.mxu0 0
        %470 = vmatpush2.bf16.msra.mxu0 0
        %471 = vmatprep.subr.bf16.mxu0 0
        %472 = vmatpush2.bf16.msra.mxu0 0
        %473 = vmatprep.subr.bf16.mxu0 0
        %474 = vmatpush2.bf16.msra.mxu0 0
        %475 = vmatprep.subr.bf16.mxu0 0
        %476 = vmatpush2.bf16.msra.mxu0 0
        %477 = vmatprep.subr.bf16.mxu0 0
        %478 = vmatpush2.bf16.msra.mxu0 0
        %479 = vmatprep.mubr.bf16.mxu0 0
        %480 = vmatmul.mubr.bf16.gmra.mxu0 %v436
        %v481 = vpop.f32.mrf.mxu0
        %v482 = vadd.f32 %v400, %v481
        %v483 = vpop.f32.mrf.mxu0
        %v484 = vpop.f32.mrf.mxu0
        %v485 = vadd.f32 %v400, %v484
        %v486 = vpop.f32.mrf.mxu0
        %487 = vmatprep.mubr.bf16.mxu0 0
        %488 = vmatmul.mubr.bf16.gmra.mxu0 %v439
        %v489 = vpop.f32.mrf.mxu0
        %v490 = vadd.f32 %v400, %v489
        %v491 = vpop.f32.mrf.mxu0
        %v492 = vpop.f32.mrf.mxu0
        %v493 = vadd.f32 %v400, %v492
        %v494 = vpop.f32.mrf.mxu0
        %495 = vmatprep.mubr.bf16.mxu0 0
        %496 = vmatmul.mubr.bf16.gmra.mxu0 %v442
        %v497 = vpop.f32.mrf.mxu0
        %v498 = vadd.f32 %v400, %v497
        %v499 = vpop.f32.mrf.mxu0
        %v500 = vpop.f32.mrf.mxu0
        %v501 = vadd.f32 %v400, %v500
        %v502 = vpop.f32.mrf.mxu0
        %503 = vmatprep.mubr.bf16.mxu0 0
        %504 = vmatmul.mubr.bf16.gmra.mxu0 %v445
        %v505 = vpop.f32.mrf.mxu0
        %v506 = vadd.f32 %v400, %v505
        %v507 = vpop.f32.mrf.mxu0
        %v508 = vpop.f32.mrf.mxu0
        %v509 = vadd.f32 %v400, %v508
        %v510 = vpop.f32.mrf.mxu0
        %511 = vdwg.mxu0
        %v512 = vmax.f32 %v482, 0.0
        %v513 = vmax.f32 %v485, 0.0
        %v514 = vmax.f32 %v490, 0.0
        %v515 = vmax.f32 %v493, 0.0
        %v516 = vmax.f32 %v498, 0.0
        %v517 = vmax.f32 %v501, 0.0
        %v518 = vmax.f32 %v506, 0.0
        %v519 = vmax.f32 %v509, 0.0
        %v520 = vld [vmem:[%s380] sm:$0xf]
        %v521 = vld [vmem:[%s380 + $0x4] sm:$0xf]
        %v522 = vld [vmem:[%s380 + $0x8] sm:$0xf]
        %v523 = vld [vmem:[%s380 + $0xc] sm:$0xf]
        %v524 = vld [vmem:[%s380 + $0x10] sm:$0xf]
        %v525 = vld [vmem:[%s380 + $0x14] sm:$0xf]
        %v526 = vld [vmem:[%s380 + $0x18] sm:$0xf]
        %v527 = vld [vmem:[%s380 + $0x1c] sm:$0xf]
        %v528 = vunpack.c.l.bf16 %v520
        %v529 = vunpack.c.l.bf16 %v521
        %v530 = vunpack.c.l.bf16 %v522
        %v531 = vunpack.c.l.bf16 %v523
        %v532 = vunpack.c.l.bf16 %v524
        %v533 = vunpack.c.l.bf16 %v525
        %v534 = vunpack.c.l.bf16 %v526
        %v535 = vunpack.c.l.bf16 %v527
        %v536 = vadd.f32 %v512, %v528
        %v537 = vadd.f32 %v513, %v529
        %v538 = vadd.f32 %v514, %v530
        %v539 = vadd.f32 %v515, %v531
        %v540 = vadd.f32 %v516, %v532
        %v541 = vadd.f32 %v517, %v533
        %v542 = vadd.f32 %v518, %v534
        %v543 = vadd.f32 %v519, %v535
        %v544 = vpack.c.bf16 %v537, %v536
        %v545 = vpack.c.bf16 %v539, %v538
        %v546 = vpack.c.bf16 %v541, %v540
        %v547 = vpack.c.bf16 %v543, %v542
        %v548 = vld [vmem:[%s4] sm:$0xf]
        %v549 = vld [vmem:[%s4 + $0x4] sm:$0xf]
        %v550 = vld [vmem:[%s4 + $0x8] sm:$0xf]
        %v551 = vld [vmem:[%s4 + $0xc] sm:$0xf]
        %v552 = vld [vmem:[%s4 + $0x10] sm:$0xf]
        %v553 = vld [vmem:[%s4 + $0x14] sm:$0xf]
        %v554 = vld [vmem:[%s4 + $0x18] sm:$0xf]
        %v555 = vld [vmem:[%s4 + $0x1c] sm:$0xf]
        %v556 = vld [vmem:[%s5] sm:$0x1]
        %v558 = vlaneseq
        %v559 = vshrl.u32 %v558, 7
        %v560 = vsub.s32 0, %v559
        %v561 = vrot.slane %v556, %v560
        %v571 = vunpack.c.l.b16 %v548
        %v572 = vunpack.c.l.b16 %v549
        %v573 = vunpack.c.l.b16 %v550
        %v574 = vunpack.c.l.b16 %v551
        %v575 = vunpack.c.l.b16 %v552
        %v576 = vunpack.c.l.b16 %v553
        %v577 = vunpack.c.l.b16 %v554
        %v578 = vunpack.c.l.b16 %v555
        %v579 = vpack.c.b16 %v572, %v571
        %v580 = vpack.c.b16 %v574, %v573
        %v581 = vpack.c.b16 %v576, %v575
        %v582 = vpack.c.b16 %v578, %v577
        %vm587 = vcmask 523264
        %v589 = vsel %vm587, %v544, 0
        %v592 = vsel %vm587, %v545, 0
        %v595 = vsel %vm587, %v546, 0
        %v598 = vsel %vm587, %v547, 0
        %600 = vmatprep.subr.bf16.mxu0 0
        %601 = vmatpush1.bf16.msra.mxu0 0
        %602 = vmatprep.subr.bf16.mxu0 0
        %603 = vmatpush1.bf16.msra.mxu0 0
        %604 = vmatprep.subr.bf16.mxu0 0
        %605 = vmatpush1.bf16.msra.mxu0 0
        %606 = vmatprep.subr.bf16.mxu0 0
        %607 = vmatpush1.bf16.msra.mxu0 0
        %608 = vmatprep.subr.bf16.mxu0 0
        %609 = vmatpush1.bf16.msra.mxu0 %v582
        %610 = vmatprep.subr.bf16.mxu0 0
        %611 = vmatpush1.bf16.msra.mxu0 %v581
        %612 = vmatprep.subr.bf16.mxu0 0
        %613 = vmatpush1.bf16.msra.mxu0 %v580
        %614 = vmatprep.subr.bf16.mxu0 0
        %615 = vmatpush1.bf16.msra.mxu0 %v579
        %616 = vmatprep.subr.bf16.mxu0 0
        %617 = vmatpush2.bf16.msra.mxu0 0
        %618 = vmatprep.subr.bf16.mxu0 0
        %619 = vmatpush2.bf16.msra.mxu0 0
        %620 = vmatprep.subr.bf16.mxu0 0
        %621 = vmatpush2.bf16.msra.mxu0 0
        %622 = vmatprep.subr.bf16.mxu0 0
        %623 = vmatpush2.bf16.msra.mxu0 0
        %624 = vmatprep.subr.bf16.mxu0 0
        %625 = vmatpush2.bf16.msra.mxu0 0
        %626 = vmatprep.subr.bf16.mxu0 0
        %627 = vmatpush2.bf16.msra.mxu0 0
        %628 = vmatprep.subr.bf16.mxu0 0
        %629 = vmatpush2.bf16.msra.mxu0 0
        %630 = vmatprep.subr.bf16.mxu0 0
        %631 = vmatpush2.bf16.msra.mxu0 0
        %632 = vmatprep.mubr.bf16.mxu0 0
        %633 = vmatmul.mubr.bf16.gmra.mxu0 %v589
        %v634 = vpop.f32.mrf.mxu0
        %v635 = vadd.f32 %v561, %v634
        %v636 = vpop.f32.mrf.mxu0
        %v637 = vpop.f32.mrf.mxu0
        %v638 = vadd.f32 %v561, %v637
        %v639 = vpop.f32.mrf.mxu0
        %640 = vmatprep.mubr.bf16.mxu0 0
        %641 = vmatmul.mubr.bf16.gmra.mxu0 %v592
        %v642 = vpop.f32.mrf.mxu0
        %v643 = vadd.f32 %v561, %v642
        %v644 = vpop.f32.mrf.mxu0
        %v645 = vpop.f32.mrf.mxu0
        %v646 = vadd.f32 %v561, %v645
        %v647 = vpop.f32.mrf.mxu0
        %648 = vmatprep.mubr.bf16.mxu0 0
        %649 = vmatmul.mubr.bf16.gmra.mxu0 %v595
        %v650 = vpop.f32.mrf.mxu0
        %v651 = vadd.f32 %v561, %v650
        %v652 = vpop.f32.mrf.mxu0
        %v653 = vpop.f32.mrf.mxu0
        %v654 = vadd.f32 %v561, %v653
        %v655 = vpop.f32.mrf.mxu0
        %656 = vmatprep.mubr.bf16.mxu0 0
        %657 = vmatmul.mubr.bf16.gmra.mxu0 %v598
        %v658 = vpop.f32.mrf.mxu0
        %v659 = vadd.f32 %v561, %v658
        %v660 = vpop.f32.mrf.mxu0
        %v661 = vpop.f32.mrf.mxu0
        %v662 = vadd.f32 %v561, %v661
        %v663 = vpop.f32.mrf.mxu0
        %664 = vdwg.mxu0
        %vm665 = vcmask 64512
        %v666 = vsel %vm665, %v635, -inf
        %v667 = vsel %vm665, %v638, -inf
        %v668 = vsel %vm665, %v643, -inf
        %v669 = vsel %vm665, %v646, -inf
        %v670 = vsel %vm665, %v651, -inf
        %v671 = vmax.f32 %v666, %v670
        %v672 = vsel %vm665, %v654, -inf
        %v673 = vmax.f32 %v667, %v672
        %v674 = vsel %vm665, %v659, -inf
        %v675 = vmax.f32 %v668, %v674
        %v676 = vsel %vm665, %v662, -inf
        %v677 = vmax.f32 %v669, %v676
        %v678 = vmax.f32 %v671, %v673
        %v679 = vmax.f32 %v675, %v677
        %v680 = vmax.f32 %v678, %v679
        %v681 = vrot.slane %v680, 4
        %v682 = vmax.f32 %v680, %v681
        %v683 = vrot.slane %v682, 2
        %v684 = vmax.f32 %v682, %v683
        %v685 = vrot.slane %v684, 1
        %v686 = vmax.f32 %v684, %v685
        %v687 = vsub.f32 %v635, %v686
        %v688 = vsub.f32 %v638, %v686
        %v689 = vsub.f32 %v643, %v686
        %v690 = vsub.f32 %v646, %v686
        %v691 = vsub.f32 %v651, %v686
        %v692 = vsub.f32 %v654, %v686
        %v693 = vsub.f32 %v659, %v686
        %v694 = vsub.f32 %v662, %v686
        %v695 = vmul.f32 %v687, 1.442695
        %v696 = vpow.pop %v695
        %v697 = vmul.f32 %v688, 1.442695
        %v698 = vpow.pop %v697
        %v699 = vmul.f32 %v689, 1.442695
        %v700 = vpow.pop %v699
        %v701 = vmul.f32 %v690, 1.442695
        %v702 = vpow.pop %v701
        %v703 = vmul.f32 %v691, 1.442695
        %v704 = vpow.pop %v703
        %v705 = vmul.f32 %v692, 1.442695
        %v706 = vpow.pop %v705
        %v707 = vmul.f32 %v693, 1.442695
        %v708 = vpow.pop %v707
        %v709 = vmul.f32 %v694, 1.442695
        %v710 = vpow.pop %v709
        %v711 = vld [vmem:[%s6] sm:$0xff]
        %v713 = vsel %vm665, %v696, 0
        %v716 = vsel %vm665, %v698, 0
        %v719 = vsel %vm665, %v700, 0
        %v722 = vsel %vm665, %v702, 0
        %v725 = vsel %vm665, %v704, 0
        %v728 = vsel %vm665, %v706, 0
        %v731 = vsel %vm665, %v708, 0
        %v734 = vsel %vm665, %v710, 0
        %736 = vmatprep.subr.mxu0 0.0
        %737 = vmatpush1.msra.mxu0 0.0
        %738 = vmatprep.subr.mxu0 0.0
        %739 = vmatpush1.msra.mxu0 0.0
        %740 = vmatprep.subr.mxu0 0.0
        %741 = vmatpush1.msra.mxu0 0.0
        %742 = vmatprep.subr.mxu0 0.0
        %743 = vmatpush1.msra.mxu0 0.0
        %744 = vmatprep.subr.mxu0 0.0
        %745 = vmatpush1.msra.mxu0 0.0
        %746 = vmatprep.subr.mxu0 0.0
        %747 = vmatpush1.msra.mxu0 0.0
        %748 = vmatprep.subr.mxu0 0.0
        %749 = vmatpush1.msra.mxu0 0.0
        %750 = vmatprep.subr.mxu0 0.0
        %751 = vmatpush1.msra.mxu0 0.0
        %752 = vmatprep.subr.mxu0 0.0
        %753 = vmatpush1.msra.mxu0 0.0
        %754 = vmatprep.subr.mxu0 0.0
        %755 = vmatpush1.msra.mxu0 0.0
        %756 = vmatprep.subr.mxu0 0.0
        %757 = vmatpush1.msra.mxu0 0.0
        %758 = vmatprep.subr.mxu0 0.0
        %759 = vmatpush1.msra.mxu0 0.0
        %760 = vmatprep.subr.mxu0 0.0
        %761 = vmatpush1.msra.mxu0 0.0
        %762 = vmatprep.subr.mxu0 0.0
        %763 = vmatpush1.msra.mxu0 0.0
        %764 = vmatprep.subr.mxu0 0.0
        %765 = vmatpush1.msra.mxu0 0.0
        %766 = vmatprep.subr.mxu0 0.0
        %767 = vmatpush1.msra.mxu0 %v711
        %768 = vmatprep.subr.mxu0 0.0
        %769 = vmatpush2.msra.mxu0 0.0
        %770 = vmatprep.subr.mxu0 0.0
        %771 = vmatpush2.msra.mxu0 0.0
        %772 = vmatprep.subr.mxu0 0.0
        %773 = vmatpush2.msra.mxu0 0.0
        %774 = vmatprep.subr.mxu0 0.0
        %775 = vmatpush2.msra.mxu0 0.0
        %776 = vmatprep.subr.mxu0 0.0
        %777 = vmatpush2.msra.mxu0 0.0
        %778 = vmatprep.subr.mxu0 0.0
        %779 = vmatpush2.msra.mxu0 0.0
        %780 = vmatprep.subr.mxu0 0.0
        %781 = vmatpush2.msra.mxu0 0.0
        %782 = vmatprep.subr.mxu0 0.0
        %783 = vmatpush2.msra.mxu0 0.0
        %784 = vmatprep.subr.mxu0 0.0
        %785 = vmatpush2.msra.mxu0 0.0
        %786 = vmatprep.subr.mxu0 0.0
        %787 = vmatpush2.msra.mxu0 0.0
        %788 = vmatprep.subr.mxu0 0.0
        %789 = vmatpush2.msra.mxu0 0.0
        %790 = vmatprep.subr.mxu0 0.0
        %791 = vmatpush2.msra.mxu0 0.0
        %792 = vmatprep.subr.mxu0 0.0
        %793 = vmatpush2.msra.mxu0 0.0
        %794 = vmatprep.subr.mxu0 0.0
        %795 = vmatpush2.msra.mxu0 0.0
        %796 = vmatprep.subr.mxu0 0.0
        %797 = vmatpush2.msra.mxu0 0.0
        %798 = vmatprep.subr.mxu0 0.0
        %799 = vmatpush2.msra.mxu0 0.0
        %800 = vmatprep.mubr.f32.mxu0 0.0
        %801 = vmatmul.mubr.f32.gmra.mxu0 %v713
        %v802 = vpop.f32.mrf.mxu0
        %v803 = vadd.f32 0.0, %v802
        %v804 = vpop.f32.mrf.mxu0
        %805 = vmatprep.mubr.f32.mxu0 0.0
        %806 = vmatmul.mubr.f32.gmra.mxu0 %v716
        %v807 = vpop.f32.mrf.mxu0
        %v808 = vadd.f32 0.0, %v807
        %v809 = vpop.f32.mrf.mxu0
        %810 = vmatprep.mubr.f32.mxu0 0.0
        %811 = vmatmul.mubr.f32.gmra.mxu0 %v719
        %v812 = vpop.f32.mrf.mxu0
        %v813 = vadd.f32 0.0, %v812
        %v814 = vpop.f32.mrf.mxu0
        %815 = vmatprep.mubr.f32.mxu0 0.0
        %816 = vmatmul.mubr.f32.gmra.mxu0 %v722
        %v817 = vpop.f32.mrf.mxu0
        %v818 = vadd.f32 0.0, %v817
        %v819 = vpop.f32.mrf.mxu0
        %820 = vmatprep.mubr.f32.mxu0 0.0
        %821 = vmatmul.mubr.f32.gmra.mxu0 %v725
        %v822 = vpop.f32.mrf.mxu0
        %v823 = vadd.f32 0.0, %v822
        %v824 = vpop.f32.mrf.mxu0
        %825 = vmatprep.mubr.f32.mxu0 0.0
        %826 = vmatmul.mubr.f32.gmra.mxu0 %v728
        %v827 = vpop.f32.mrf.mxu0
        %v828 = vadd.f32 0.0, %v827
        %v829 = vpop.f32.mrf.mxu0
        %830 = vmatprep.mubr.f32.mxu0 0.0
        %831 = vmatmul.mubr.f32.gmra.mxu0 %v731
        %v832 = vpop.f32.mrf.mxu0
        %v833 = vadd.f32 0.0, %v832
        %v834 = vpop.f32.mrf.mxu0
        %835 = vmatprep.mubr.f32.mxu0 0.0
        %836 = vmatmul.mubr.f32.gmra.mxu0 %v734
        %v837 = vpop.f32.mrf.mxu0
        %v838 = vadd.f32 0.0, %v837
        %v839 = vpop.f32.mrf.mxu0
        %840 = vdwg.mxu0
        %v841 = vld [vmem:[%s7] sm:$0xff]
        %v842 = vmul.f32 %v803, %v536
        %v843 = vmul.f32 %v808, %v537
        %v844 = vmul.f32 %v813, %v538
        %v845 = vmul.f32 %v818, %v539
        %v846 = vmul.f32 %v823, %v540
        %v847 = vmul.f32 %v828, %v541
        %v848 = vmul.f32 %v833, %v542
        %v849 = vmul.f32 %v838, %v543
        %v851 = vsel %vm587, %v841, 0
        %853 = vmatprep.subr.mxu0 0.0
        %854 = vmatpush1.msra.mxu0 0.0
        %855 = vmatprep.subr.mxu0 0.0
        %856 = vmatpush1.msra.mxu0 0.0
        %857 = vmatprep.subr.mxu0 0.0
        %858 = vmatpush1.msra.mxu0 0.0
        %859 = vmatprep.subr.mxu0 0.0
        %860 = vmatpush1.msra.mxu0 0.0
        %861 = vmatprep.subr.mxu0 0.0
        %862 = vmatpush1.msra.mxu0 0.0
        %863 = vmatprep.subr.mxu0 0.0
        %864 = vmatpush1.msra.mxu0 0.0
        %865 = vmatprep.subr.mxu0 0.0
        %866 = vmatpush1.msra.mxu0 0.0
        %867 = vmatprep.subr.mxu0 0.0
        %868 = vmatpush1.msra.mxu0 0.0
        %869 = vmatprep.subr.mxu0 0.0
        %870 = vmatpush1.msra.mxu0 %v849
        %871 = vmatprep.subr.mxu0 0.0
        %872 = vmatpush1.msra.mxu0 %v848
        %873 = vmatprep.subr.mxu0 0.0
        %874 = vmatpush1.msra.mxu0 %v847
        %875 = vmatprep.subr.mxu0 0.0
        %876 = vmatpush1.msra.mxu0 %v846
        %877 = vmatprep.subr.mxu0 0.0
        %878 = vmatpush1.msra.mxu0 %v845
        %879 = vmatprep.subr.mxu0 0.0
        %880 = vmatpush1.msra.mxu0 %v844
        %881 = vmatprep.subr.mxu0 0.0
        %882 = vmatpush1.msra.mxu0 %v843
        %883 = vmatprep.subr.mxu0 0.0
        %884 = vmatpush1.msra.mxu0 %v842
        %885 = vmatprep.subr.mxu0 0.0
        %886 = vmatpush2.msra.mxu0 0.0
        %887 = vmatprep.subr.mxu0 0.0
        %888 = vmatpush2.msra.mxu0 0.0
        %889 = vmatprep.subr.mxu0 0.0
        %890 = vmatpush2.msra.mxu0 0.0
        %891 = vmatprep.subr.mxu0 0.0
        %892 = vmatpush2.msra.mxu0 0.0
        %893 = vmatprep.subr.mxu0 0.0
        %894 = vmatpush2.msra.mxu0 0.0
        %895 = vmatprep.subr.mxu0 0.0
        %896 = vmatpush2.msra.mxu0 0.0
        %897 = vmatprep.subr.mxu0 0.0
        %898 = vmatpush2.msra.mxu0 0.0
        %899 = vmatprep.subr.mxu0 0.0
        %900 = vmatpush2.msra.mxu0 0.0
        %901 = vmatprep.subr.mxu0 0.0
        %902 = vmatpush2.msra.mxu0 0.0
        %903 = vmatprep.subr.mxu0 0.0
        %904 = vmatpush2.msra.mxu0 0.0
        %905 = vmatprep.subr.mxu0 0.0
        %906 = vmatpush2.msra.mxu0 0.0
        %907 = vmatprep.subr.mxu0 0.0
        %908 = vmatpush2.msra.mxu0 0.0
        %909 = vmatprep.subr.mxu0 0.0
        %910 = vmatpush2.msra.mxu0 0.0
        %911 = vmatprep.subr.mxu0 0.0
        %912 = vmatpush2.msra.mxu0 0.0
        %913 = vmatprep.subr.mxu0 0.0
        %914 = vmatpush2.msra.mxu0 0.0
        %915 = vmatprep.subr.mxu0 0.0
        %916 = vmatpush2.msra.mxu0 0.0
        %917 = vmatprep.mubr.f32.mxu0 0.0
        %918 = vmatmul.mubr.f32.gmra.mxu0 %v851
        %v919 = vpop.f32.mrf.mxu0
        %v920 = vadd.f32 0.0, %v919
        %v921 = vpop.f32.mrf.mxu0
        %922 = vdwg.mxu0
        %923 = vmatprep.subr.mxu0 0.0
        %924 = vmatpush1.msra.mxu0 0.0
        %925 = vmatprep.subr.mxu0 0.0
        %926 = vmatpush1.msra.mxu0 0.0
        %927 = vmatprep.subr.mxu0 0.0
        %928 = vmatpush1.msra.mxu0 0.0
        %929 = vmatprep.subr.mxu0 0.0
        %930 = vmatpush1.msra.mxu0 0.0
        %931 = vmatprep.subr.mxu0 0.0
        %932 = vmatpush1.msra.mxu0 0.0
        %933 = vmatprep.subr.mxu0 0.0
        %934 = vmatpush1.msra.mxu0 0.0
        %935 = vmatprep.subr.mxu0 0.0
        %936 = vmatpush1.msra.mxu0 0.0
        %937 = vmatprep.subr.mxu0 0.0
        %938 = vmatpush1.msra.mxu0 0.0
        %939 = vmatprep.subr.mxu0 0.0
        %940 = vmatpush1.msra.mxu0 %v838
        %941 = vmatprep.subr.mxu0 0.0
        %942 = vmatpush1.msra.mxu0 %v833
        %943 = vmatprep.subr.mxu0 0.0
        %944 = vmatpush1.msra.mxu0 %v828
        %945 = vmatprep.subr.mxu0 0.0
        %946 = vmatpush1.msra.mxu0 %v823
        %947 = vmatprep.subr.mxu0 0.0
        %948 = vmatpush1.msra.mxu0 %v818
        %949 = vmatprep.subr.mxu0 0.0
        %950 = vmatpush1.msra.mxu0 %v813
        %951 = vmatprep.subr.mxu0 0.0
        %952 = vmatpush1.msra.mxu0 %v808
        %953 = vmatprep.subr.mxu0 0.0
        %954 = vmatpush1.msra.mxu0 %v803
        %955 = vmatprep.subr.mxu0 0.0
        %956 = vmatpush2.msra.mxu0 0.0
        %957 = vmatprep.subr.mxu0 0.0
        %958 = vmatpush2.msra.mxu0 0.0
        %959 = vmatprep.subr.mxu0 0.0
        %960 = vmatpush2.msra.mxu0 0.0
        %961 = vmatprep.subr.mxu0 0.0
        %962 = vmatpush2.msra.mxu0 0.0
        %963 = vmatprep.subr.mxu0 0.0
        %964 = vmatpush2.msra.mxu0 0.0
        %965 = vmatprep.subr.mxu0 0.0
        %966 = vmatpush2.msra.mxu0 0.0
        %967 = vmatprep.subr.mxu0 0.0
        %968 = vmatpush2.msra.mxu0 0.0
        %969 = vmatprep.subr.mxu0 0.0
        %970 = vmatpush2.msra.mxu0 0.0
        %971 = vmatprep.subr.mxu0 0.0
        %972 = vmatpush2.msra.mxu0 0.0
        %973 = vmatprep.subr.mxu0 0.0
        %974 = vmatpush2.msra.mxu0 0.0
        %975 = vmatprep.subr.mxu0 0.0
        %976 = vmatpush2.msra.mxu0 0.0
        %977 = vmatprep.subr.mxu0 0.0
        %978 = vmatpush2.msra.mxu0 0.0
        %979 = vmatprep.subr.mxu0 0.0
        %980 = vmatpush2.msra.mxu0 0.0
        %981 = vmatprep.subr.mxu0 0.0
        %982 = vmatpush2.msra.mxu0 0.0
        %983 = vmatprep.subr.mxu0 0.0
        %984 = vmatpush2.msra.mxu0 0.0
        %985 = vmatprep.subr.mxu0 0.0
        %986 = vmatpush2.msra.mxu0 0.0
        %987 = vmatprep.mubr.f32.mxu0 0.0
        %988 = vmatmul.mubr.f32.gmra.mxu0 %v851
        %v989 = vpop.f32.mrf.mxu0
        %v990 = vadd.f32 0.0, %v989
        %v991 = vpop.f32.mrf.mxu0
        %992 = vdwg.mxu0
        %v993 = vmax.f32 %v990, 1e-30
        %v994 = vrcp.pop %v993
        %v995 = vmul.f32 %v920, %v994
        %v996 = vld [vmem:[%s8] sm:$0xf]
        %v997 = vld [vmem:[%s8 + $0x4] sm:$0xf]
        %v998 = vld [vmem:[%s8 + $0x8] sm:$0xf]
        %v999 = vld [vmem:[%s8 + $0xc] sm:$0xf]
        %v1000 = vld [vmem:[%s8 + $0x10] sm:$0xf]
        %v1001 = vld [vmem:[%s8 + $0x14] sm:$0xf]
        %v1002 = vld [vmem:[%s8 + $0x18] sm:$0xf]
        %v1003 = vld [vmem:[%s8 + $0x1c] sm:$0xf]
        %v1004 = vld [vmem:[%s9] sm:$0x1]
        %v1005 = vpack.c.bf16 %v995, %v995
        %v1007 = vlaneseq
        %v1008 = vshrl.u32 %v1007, 7
        %v1009 = vsub.s32 0, %v1008
        %v1010 = vrot.slane %v1004, %v1009
        %v1020 = vunpack.c.l.b16 %v996
        %v1021 = vunpack.c.l.b16 %v997
        %v1022 = vunpack.c.l.b16 %v998
        %v1023 = vunpack.c.l.b16 %v999
        %v1024 = vunpack.c.l.b16 %v1000
        %v1025 = vunpack.c.l.b16 %v1001
        %v1026 = vunpack.c.l.b16 %v1002
        %v1027 = vunpack.c.l.b16 %v1003
        %v1028 = vpack.c.b16 %v1021, %v1020
        %v1029 = vpack.c.b16 %v1023, %v1022
        %v1030 = vpack.c.b16 %v1025, %v1024
        %v1031 = vpack.c.b16 %v1027, %v1026
        %v1037 = vsel %vm587, %v1005, 0
        %1039 = vmatprep.subr.bf16.mxu0 0
        %1040 = vmatpush1.bf16.msra.mxu0 0
        %1041 = vmatprep.subr.bf16.mxu0 0
        %1042 = vmatpush1.bf16.msra.mxu0 0
        %1043 = vmatprep.subr.bf16.mxu0 0
        %1044 = vmatpush1.bf16.msra.mxu0 0
        %1045 = vmatprep.subr.bf16.mxu0 0
        %1046 = vmatpush1.bf16.msra.mxu0 0
        %1047 = vmatprep.subr.bf16.mxu0 0
        %1048 = vmatpush1.bf16.msra.mxu0 %v1031
        %1049 = vmatprep.subr.bf16.mxu0 0
        %1050 = vmatpush1.bf16.msra.mxu0 %v1030
        %1051 = vmatprep.subr.bf16.mxu0 0
        %1052 = vmatpush1.bf16.msra.mxu0 %v1029
        %1053 = vmatprep.subr.bf16.mxu0 0
        %1054 = vmatpush1.bf16.msra.mxu0 %v1028
        %1055 = vmatprep.subr.bf16.mxu0 0
        %1056 = vmatpush2.bf16.msra.mxu0 0
        %1057 = vmatprep.subr.bf16.mxu0 0
        %1058 = vmatpush2.bf16.msra.mxu0 0
        %1059 = vmatprep.subr.bf16.mxu0 0
        %1060 = vmatpush2.bf16.msra.mxu0 0
        %1061 = vmatprep.subr.bf16.mxu0 0
        %1062 = vmatpush2.bf16.msra.mxu0 0
        %1063 = vmatprep.subr.bf16.mxu0 0
        %1064 = vmatpush2.bf16.msra.mxu0 0
        %1065 = vmatprep.subr.bf16.mxu0 0
        %1066 = vmatpush2.bf16.msra.mxu0 0
        %1067 = vmatprep.subr.bf16.mxu0 0
        %1068 = vmatpush2.bf16.msra.mxu0 0
        %1069 = vmatprep.subr.bf16.mxu0 0
        %1070 = vmatpush2.bf16.msra.mxu0 0
        %1071 = vmatprep.mubr.bf16.mxu0 0
        %1072 = vmatmul.mubr.bf16.gmra.mxu0 %v1037
        %v1073 = vpop.f32.mrf.mxu0
        %v1074 = vadd.f32 %v1010, %v1073
        %v1075 = vpop.f32.mrf.mxu0
        %v1076 = vpop.f32.mrf.mxu0
        %v1077 = vpop.f32.mrf.mxu0
        %1078 = vdwg.mxu0
        %v1079 = vmax.f32 %v1074, 0.0
        %1080 = vst.msk [vmem:[%s369] sm:$0xff] %vm434, %v1079
        %s1081 = sand.u32 %s252, 1
        %s1082 = scalar_lea.sflag [#allocation3], %s1081
        %s1083 = sand.u32 %s252, 1
        %s1084 = smul.addr %s1083, 8
        %s1085 = scalar_lea.vmem [#allocation2], %s1084
        // Predicated region
        $region61: #{tpu_custom_call.1} parent=59 // pred_check
          %p1086 = pneg %p262
        $region62: #{tpu_custom_call.1} parent=59 // pred_check_branch
          %1088 = sbr.rel (%p1086) target = $region64
        $region63: #{tpu_custom_call.1} parent=59 // pred_region
          %s1090 = ssub.s32 128, 128
          %1091 = vsyncadd %s1082, %s1090
          %s1092 = smul.addr %s24, 128
          %s1093 = scalar_lea.hbm %s10, %s1092
          %s1095 = sshll.u32 %s1085, 4
          %s1096 = int_to_ptr.vmem [resolvable:$true] %s1095
          %1098 = dma.vmem_to_hbm [thread:$0]  %s1096, 128, %s1093, %s1082
        $region64: #{tpu_custom_call.1} parent=59 // pred_fallthru
          _
      $region60: #{tpu_custom_call.1} parent=5 // pred_fallthru
        _
      %p1099 = scmp.le.s32.totalorder 2, %s19
      // Predicated region
      $region65: #{tpu_custom_call.1} parent=5 // pred_check
        %p1100 = pneg %p1099
      $region66: #{tpu_custom_call.1} parent=5 // pred_check_branch
        %1102 = sbr.rel (%p1100) target = $region68
      $region67: #{tpu_custom_call.1} parent=5 // pred_region
        %s1103 = ssub.s32 %s19, 2
        // Predicated region
        $region69: #{tpu_custom_call.1} parent=67 // pred_check
          %p1104 = pneg %p268
        $region70: #{tpu_custom_call.1} parent=67 // pred_check_branch
          %1106 = sbr.rel (%p1104) target = $region72
        $region71: #{tpu_custom_call.1} parent=67 // pred_region
          %s1107 = sand.u32 %s253, 1
          %s1108 = scalar_lea.sflag [#allocation3], %s1107
          %s1109 = sand.u32 %s253, 1
          %s1110 = smul.addr %s1109, 8
          %s1111 = scalar_lea.vmem [#allocation2], %s1110
          %1112 = dma.done %s1108, 128
        $region72: #{tpu_custom_call.1} parent=67 // pred_fallthru
          _
      $region68: #{tpu_custom_call.1} parent=5 // pred_fallthru
        _
    $region6: #{tpu_custom_call.1} parent=1 // loop_footer
      %s23 = sadd.s32 1, %s19
    $region7: #{tpu_custom_call.1} parent=1 // loop_footer_branch
      %18 = sbr.rel target = $region3
    $region8: #{tpu_custom_call.1} parent=1 // loop_exit
      _
    %1113 = vsyncpa [#allocation3], 1
    %s1114 = scalar_lea.sflag [#allocation3], 1
    %1115 = vsyncpa %s1114, 1

</llo_original>
